<compile_context>
chip_gen: v6e
topology: v6e:2x2x1
jax: 0.10.0
libtpu: 0.0.40
codegen_flags: <defaults>
</compile_context>

<pallas_src>
import math

import numpy as np

import jax
import jax.numpy as jnp
from jax.experimental import pallas as pl
from jax.experimental.pallas import tpu as pltpu


def _leaky(x, slope=0.01):
    # nn.LeakyReLU default negative_slope = 0.01
    return jnp.where(x > 0, x, slope * x)


# ----------------------------------------------------------------------------
# fused GAT-layer kernel
# ----------------------------------------------------------------------------
def _make_gat_kernel(N, H, f_out, residual, slope):
    f32 = jnp.float32
    bf16 = jnp.bfloat16

    def kernel(v_ref, wcat_ref, ublk_ref, a1_ref, a2_ref, rrep_ref, keye_ref,
               expand_ref, mask_ref, wsq_ref, bsq_ref, o_ref, hp_ref):
        v = v_ref[...]                                                    # (N, F_in) f32

        # (1) head-stacked projection: h_all[:, h*f:(h+1)*f] = V @ W_h  (bf16 MXU operands)
        h_all = jnp.dot(v.astype(bf16), wcat_ref[...],
                        preferred_element_type=f32)                       # (N, H*f_out)

        # (2) factorized attention logits.
        #     s1_h[k] = h_h[k] . (Emb_h @ a1_h),  s2_h[k] = h_h[k] . (Emb_h @ a2_h)
        p = jnp.dot(h_all, ublk_ref[...], preferred_element_type=f32)     # (N, 2H)
        p1 = p[:, :H]                                                     # s1 per head
        p2 = p[:, H:]                                                     # s2 per head
        keye = keye_ref[...]
        #     e_h[i, j] = s1_h[idx1[i,j]] + s2_h[idx2[i,j]]  — the quirky torch
        #     repeat/cat(dim=1)/view mapping, realized with static 0/1 matrices.
        q1 = jnp.dot(rrep_ref[...],
                     jnp.dot(p1, expand_ref[...], preferred_element_type=f32),
                     preferred_element_type=f32) * keye                   # (N*N, H*N)
        q2 = jnp.dot(rrep_ref[...],
                     jnp.dot(p2, expand_ref[...], preferred_element_type=f32),
                     preferred_element_type=f32) * keye
        e_all = (jnp.dot(a1_ref[...], q1, preferred_element_type=f32)
                 + jnp.dot(a2_ref[...], q2, preferred_element_type=f32))  # (N, H*N)
        e_all = _leaky(e_all, slope)

        # (3) per-head masked softmax + aggregation (H is tiny & static -> unrolled)
        h16 = h_all.astype(bf16)
        for h in range(H):
            e_h = e_all[:, h * N:(h + 1) * N]                             # (N, N)
            att = jnp.where(mask_ref[h] > 0, e_h, -9e15)                  # replacement, not bias
            att = att - jnp.max(att, axis=-1, keepdims=True)
            att = jnp.exp(att)
            att = att / jnp.sum(att, axis=-1, keepdims=True)
            # TODO(synk): attention dropout skipped (inference semantics; no RNG match).
            hp = jnp.dot(att.astype(bf16), h16[:, h * f_out:(h + 1) * f_out],
                         preferred_element_type=f32)                      # (N, f_out)
            hp_ref[:, h * f_out:(h + 1) * f_out] = hp.astype(bf16)

        # (4) single head-stacked squeeze matmul + LeakyReLU (+ residual)
        out = jnp.dot(hp_ref[...], wsq_ref[...], preferred_element_type=f32) + bsq_ref[...]
        out = _leaky(out, slope)
        if residual:                                                      # trace-time gate
            out = out + v
        o_ref[...] = out

    return kernel


# ----------------------------------------------------------------------------
# wrapper
# ----------------------------------------------------------------------------
def gat_layer_forward(V, adj, params, negative_slope=0.01):
    """make_GraphAttentionLayer.forward(V, adj).

    V   : (1, N, F_in)          adj : (1, N, no_A, N)
    returns (output (1, N, F_out), adj)
    """
    assert V.shape[0] == 1 and adj.shape[0] == 1, "reference layer only supports batch == 1"
    N, f_in = V.shape[1], V.shape[2]
    no_A = adj.shape[2]
    H = no_A + 1
    W, Emb, a, Wsq, bsq = params["W"], params["Emb"], params["a"], params["Wsq"], params["bsq"]
    f_out = W.shape[2]
    e_dim = Emb.shape[2]
    residual = (f_in == f_out)

    # --- head-stacked bf16 MXU operands --------------------------------------
    wcat = jnp.moveaxis(W, 0, 1).reshape(f_in, H * f_out).astype(jnp.bfloat16)
    wsq16 = Wsq.astype(jnp.bfloat16)

    # --- fold Emb_h @ a (per head) -> block-diagonal (H*f_out, 2H) matrix -----
    u1 = jnp.einsum("hfe,he->hf", Emb, a[:, :e_dim, 0])                   # (H, f_out)
    u2 = jnp.einsum("hfe,he->hf", Emb, a[:, e_dim:, 0])
    eyeH = jnp.eye(H, dtype=jnp.float32)
    ublk = jnp.concatenate(
        [jnp.einsum("hf,hg->hfg", u1, eyeH).reshape(H * f_out, H),
         jnp.einsum("hf,hg->hfg", u2, eyeH).reshape(H * f_out, H)],
        axis=1)                                                           # (H*f_out, 2H)

    # --- static gather structure: exact transcription of torch's
    #     repeat(1,1,N).view / repeat(1,N,1) / cat(dim=1) / view(1,N,N,-1) ------
    base = np.arange(N)
    cat = np.concatenate([np.repeat(base, N), np.tile(base, N)])          # concat row -> hemb row
    q = np.arange(N * N)
    idx1 = cat[2 * q]               # source row feeding a[:e_dim] at (i, j)
    idx2 = cat[2 * q + 1]           # source row feeding a[e_dim:] at (i, j)
    a1sel = np.zeros((N, N * N), np.float32)
    a2sel = np.zeros((N, N * N), np.float32)
    a1sel[q // N, idx1 * N + q % N] = 1.0
    a2sel[q // N, idx2 * N + q % N] = 1.0
    rrep = np.repeat(np.eye(N, dtype=np.float32), N, axis=0)              # (N*N, N)
    keye = np.tile(np.eye(N, dtype=np.float32), (N, H))                   # (N*N, H*N)
    expand = np.repeat(np.eye(H, dtype=np.float32), N, axis=1)            # (H, H*N)

    # --- adjacency masks per head; last head is the identity (self loops) -----
    mask = jnp.concatenate(
        [jnp.moveaxis(adj[0], 1, 0),
         jnp.eye(N, dtype=jnp.float32)[None]], axis=0).astype(jnp.float32)  # (H, N, N)

    kernel = _make_gat_kernel(N, H, f_out, residual, negative_slope)
    out = pl.pallas_call(
        kernel,
        out_shape=jax.ShapeDtypeStruct((N, f_out), jnp.float32),
        scratch_shapes=[pltpu.VMEM((N, H * f_out), jnp.bfloat16)],
    )(V[0], wcat, ublk,
      jnp.asarray(a1sel), jnp.asarray(a2sel), jnp.asarray(rrep),
      jnp.asarray(keye), jnp.asarray(expand),
      mask, wsq16, bsq)

    return out[None], adj


# ----------------------------------------------------------------------------
# pure-JAX reference (literal transcription of the torch forward; same bf16
# MXU-operand rounding as the kernel so the comparison is tight)
# ----------------------------------------------------------------------------
def gat_reference(V, adj, params, slope=0.01):
    bf16, f32 = jnp.bfloat16, jnp.float32
    W, Emb, a, Wsq, bsq = params["W"], params["Emb"], params["a"], params["Wsq"], params["bsq"]
    N = V.shape[1]
    H = W.shape[0]
    e_dim = Emb.shape[2]
    v = V[0]
    outs = []
    for h in range(H):
        hm = jnp.dot(v.astype(bf16), W[h].astype(bf16), preferred_element_type=f32)
        hemb = jnp.dot(hm, Emb[h])
        rep1 = jnp.tile(hemb, (1, N)).reshape(N * N, e_dim)   # repeat(1,1,N).view(1,N*N,-1)
        rep2 = jnp.tile(hemb, (N, 1))                         # repeat(1,N,1)
        a_input = jnp.concatenate([rep1, rep2], axis=0).reshape(N, N, 2 * e_dim)
        e = _leaky(jnp.einsum("ijk,kl->ij", a_input, a[h]), slope)
        m = adj[0, :, h, :] if h < H - 1 else jnp.eye(N, dtype=f32)
        att = jnp.where(m > 0, e, -9e15)
        att = jax.nn.softmax(att, axis=-1)
        outs.append(jnp.dot(att.astype(bf16), hm.astype(bf16), preferred_element_type=f32))
    hp_cat = jnp.concatenate(outs, axis=-1).astype(bf16)
    out = jnp.dot(hp_cat, Wsq.astype(bf16), preferred_element_type=f32) + bsq
    out = _leaky(out, slope)
    if V.shape[2] == W.shape[2]:
        out = out + v
    return out[None]


# ----------------------------------------------------------------------------
# deterministic parameter init (shapes follow the module __init__)
# ----------------------------------------------------------------------------
def _xavier_uniform(key, shape):
    fan_in, fan_out = shape[-2], shape[-1]
    bound = math.sqrt(6.0 / (fan_in + fan_out))
    return jax.random.uniform(key, shape, jnp.float32, -bound, bound)


def init_gat_params(key, no_A, f_in, f_out):
    H = no_A + 1
    e_dim = f_out // 8
    ks = jax.random.split(key, 5)
    W = _xavier_uniform(ks[0], (H, f_in, f_out))        # make_Parameter_W per head
    Emb = _xavier_uniform(ks[1], (H, f_out, e_dim))     # embedding per head
    a = _xavier_uniform(ks[2], (H, 2 * e_dim, 1))       # make_Parameter_a per head
    bound = 1.0 / math.sqrt(f_out * H)                  # nn.Linear(out*H, out) default-ish init
    Wsq = jax.random.uniform(ks[3], (H * f_out, f_out), jnp.float32, -bound, bound)
    bsq = jax.random.uniform(ks[4], (1, f_out), jnp.float32, -bound, bound)
    return {"W": W, "Emb": Emb, "a": a, "Wsq": Wsq, "bsq": bsq}


# ----------------------------------------------------------------------------
# main
# ----------------------------------------------------------------------------
if __name__ == "__main__":
    key = jax.random.PRNGKey(0)
    N, F_IN, F_OUT, NO_A = 8, 64, 64, 2     # in == out -> residual branch exercised
    # dropout = 0.1 in the module; eval semantics -> identity (see TODO in kernel)

    k_v, k_a, k_p = jax.random.split(key, 3)
    V = jax.random.normal(k_v, (1, N, F_IN), jnp.float32)
    A = (jax.random.uniform(k_a, (1, N, NO_A, N)) > 0.5).astype(jnp.float32)
    params = init_gat_params(k_p, NO_A, F_IN, F_OUT)

    fwd = jax.jit(gat_layer_forward)
    out, adj_out = fwd(V, A, params)
    jax.block_until_ready((out, adj_out))

    ref = gat_reference(V, A, params)
    err = float(jnp.max(jnp.abs(out - ref)))

    assert out.shape == (1, N, F_OUT)
    assert adj_out.shape == A.shape
    assert bool(jnp.isfinite(out).all())
    assert err < 2e-2, f"max |kernel - reference| = {err}"
    print("KERNEL_OK")
</pallas_src>

<mosaic_0001>
module attributes {stable_mosaic.version = 11 : i64} {
  func.func @kernel(%arg0: memref<8x64xf32, #tpu.memory_space<vmem>>, %arg1: memref<64x192xbf16, #tpu.memory_space<vmem>>, %arg2: memref<192x6xf32, #tpu.memory_space<vmem>>, %arg3: memref<8x64xf32, #tpu.memory_space<vmem>>, %arg4: memref<8x64xf32, #tpu.memory_space<vmem>>, %arg5: memref<64x8xf32, #tpu.memory_space<vmem>>, %arg6: memref<64x24xf32, #tpu.memory_space<vmem>>, %arg7: memref<3x24xf32, #tpu.memory_space<vmem>>, %arg8: memref<3x8x8xf32, #tpu.memory_space<vmem>>, %arg9: memref<192x64xbf16, #tpu.memory_space<vmem>>, %arg10: memref<1x64xf32, #tpu.memory_space<vmem>>, %arg11: memref<8x64xf32, #tpu.memory_space<vmem>>, %arg12: memref<8x192xbf16, #tpu.memory_space<vmem>>) attributes {dimension_semantics = [], scalar_prefetch = 0 : i64, scratch_operands = 1 : i64, tpu.core_type = #tpu.core_type<tc>} {
    %c0 = arith.constant 0 : index
    %c0_0 = arith.constant 0 : index
    %0 = vector.load %arg0[%c0, %c0_0] : memref<8x64xf32, #tpu.memory_space<vmem>>, vector<8x64xf32>
    %1 = arith.truncf %0 : vector<8x64xf32> to vector<8x64xbf16>
    %c0_1 = arith.constant 0 : index
    %c0_2 = arith.constant 0 : index
    %2 = vector.load %arg1[%c0_1, %c0_2] : memref<64x192xbf16, #tpu.memory_space<vmem>>, vector<64x192xbf16>
    %cst = arith.constant dense<0.000000e+00> : vector<8x192xf32>
    %3 = tpu.matmul %1, %2, %cst {dimension_numbers = #tpu.dot_dimension_numbers<[1], [0], [0], [1], [0, 0, 1, 1], [], []>} : vector<8x64xbf16>, vector<64x192xbf16>, vector<8x192xf32> -> vector<8x192xf32>
    %c0_3 = arith.constant 0 : index
    %c0_4 = arith.constant 0 : index
    %4 = vector.load %arg2[%c0_3, %c0_4] : memref<192x6xf32, #tpu.memory_space<vmem>>, vector<192x6xf32>
    %cst_5 = arith.constant dense<0.000000e+00> : vector<8x6xf32>
    %5 = tpu.matmul %3, %4, %cst_5 {dimension_numbers = #tpu.dot_dimension_numbers<[1], [0], [0], [1], [0, 0, 1, 1], [], []>} : vector<8x192xf32>, vector<192x6xf32>, vector<8x6xf32> -> vector<8x6xf32>
    %6 = vector.extract_strided_slice %5 {offsets = [0, 0], sizes = [8, 3], strides = [1, 1]} : vector<8x6xf32> to vector<8x3xf32>
    %7 = vector.extract_strided_slice %5 {offsets = [0, 3], sizes = [8, 3], strides = [1, 1]} : vector<8x6xf32> to vector<8x3xf32>
    %c0_6 = arith.constant 0 : index
    %c0_7 = arith.constant 0 : index
    %8 = vector.load %arg6[%c0_6, %c0_7] : memref<64x24xf32, #tpu.memory_space<vmem>>, vector<64x24xf32>
    %c0_8 = arith.constant 0 : index
    %c0_9 = arith.constant 0 : index
    %9 = vector.load %arg5[%c0_8, %c0_9] : memref<64x8xf32, #tpu.memory_space<vmem>>, vector<64x8xf32>
    %c0_10 = arith.constant 0 : index
    %c0_11 = arith.constant 0 : index
    %10 = vector.load %arg7[%c0_10, %c0_11] : memref<3x24xf32, #tpu.memory_space<vmem>>, vector<3x24xf32>
    %cst_12 = arith.constant dense<0.000000e+00> : vector<8x24xf32>
    %11 = tpu.matmul %6, %10, %cst_12 {dimension_numbers = #tpu.dot_dimension_numbers<[1], [0], [0], [1], [0, 0, 1, 1], [], []>} : vector<8x3xf32>, vector<3x24xf32>, vector<8x24xf32> -> vector<8x24xf32>
    %cst_13 = arith.constant dense<0.000000e+00> : vector<64x24xf32>
    %12 = tpu.matmul %9, %11, %cst_13 {dimension_numbers = #tpu.dot_dimension_numbers<[1], [0], [0], [1], [0, 0, 1, 1], [], []>} : vector<64x8xf32>, vector<8x24xf32>, vector<64x24xf32> -> vector<64x24xf32>
    %13 = arith.mulf %12, %8 : vector<64x24xf32>
    %c0_14 = arith.constant 0 : index
    %c0_15 = arith.constant 0 : index
    %14 = vector.load %arg5[%c0_14, %c0_15] : memref<64x8xf32, #tpu.memory_space<vmem>>, vector<64x8xf32>
    %c0_16 = arith.constant 0 : index
    %c0_17 = arith.constant 0 : index
    %15 = vector.load %arg7[%c0_16, %c0_17] : memref<3x24xf32, #tpu.memory_space<vmem>>, vector<3x24xf32>
    %cst_18 = arith.constant dense<0.000000e+00> : vector<8x24xf32>
    %16 = tpu.matmul %7, %15, %cst_18 {dimension_numbers = #tpu.dot_dimension_numbers<[1], [0], [0], [1], [0, 0, 1, 1], [], []>} : vector<8x3xf32>, vector<3x24xf32>, vector<8x24xf32> -> vector<8x24xf32>
    %cst_19 = arith.constant dense<0.000000e+00> : vector<64x24xf32>
    %17 = tpu.matmul %14, %16, %cst_19 {dimension_numbers = #tpu.dot_dimension_numbers<[1], [0], [0], [1], [0, 0, 1, 1], [], []>} : vector<64x8xf32>, vector<8x24xf32>, vector<64x24xf32> -> vector<64x24xf32>
    %18 = arith.mulf %17, %8 : vector<64x24xf32>
    %c0_20 = arith.constant 0 : index
    %c0_21 = arith.constant 0 : index
    %19 = vector.load %arg3[%c0_20, %c0_21] : memref<8x64xf32, #tpu.memory_space<vmem>>, vector<8x64xf32>
    %cst_22 = arith.constant dense<0.000000e+00> : vector<8x24xf32>
    %20 = tpu.matmul %19, %13, %cst_22 {dimension_numbers = #tpu.dot_dimension_numbers<[1], [0], [0], [1], [0, 0, 1, 1], [], []>} : vector<8x64xf32>, vector<64x24xf32>, vector<8x24xf32> -> vector<8x24xf32>
    %c0_23 = arith.constant 0 : index
    %c0_24 = arith.constant 0 : index
    %21 = vector.load %arg4[%c0_23, %c0_24] : memref<8x64xf32, #tpu.memory_space<vmem>>, vector<8x64xf32>
    %cst_25 = arith.constant dense<0.000000e+00> : vector<8x24xf32>
    %22 = tpu.matmul %21, %18, %cst_25 {dimension_numbers = #tpu.dot_dimension_numbers<[1], [0], [0], [1], [0, 0, 1, 1], [], []>} : vector<8x64xf32>, vector<64x24xf32>, vector<8x24xf32> -> vector<8x24xf32>
    %23 = arith.addf %20, %22 : vector<8x24xf32>
    %cst_26 = arith.constant 0.000000e+00 : f32
    %24 = vector.broadcast %cst_26 : f32 to vector<8x24xf32>
    %25 = arith.cmpf ogt, %23, %24 : vector<8x24xf32>
    %cst_27 = arith.constant 0.00999999977 : f32
    %26 = vector.broadcast %cst_27 : f32 to vector<8x24xf32>
    %27 = arith.mulf %26, %23 : vector<8x24xf32>
    %28 = arith.select %25, %23, %27 : vector<8x24xi1>, vector<8x24xf32>
    %29 = arith.truncf %3 : vector<8x192xf32> to vector<8x192xbf16>
    %30 = vector.extract_strided_slice %28 {offsets = [0, 0], sizes = [8, 8], strides = [1, 1]} : vector<8x24xf32> to vector<8x8xf32>
    %c0_28 = arith.constant 0 : index
    %c0_29 = arith.constant 0 : index
    %c0_30 = arith.constant 0 : index
    %31 = vector.load %arg8[%c0_28, %c0_29, %c0_30] : memref<3x8x8xf32, #tpu.memory_space<vmem>>, vector<1x8x8xf32>
    %32 = vector.shape_cast %31 : vector<1x8x8xf32> to vector<8x8xf32>
    %cst_31 = arith.constant 0.000000e+00 : f32
    %33 = vector.broadcast %cst_31 : f32 to vector<8x8xf32>
    %34 = arith.cmpf ogt, %32, %33 : vector<8x8xf32>
    %cst_32 = arith.constant -9.000000e+15 : f32
    %35 = vector.broadcast %cst_32 : f32 to vector<8x8xf32>
    %36 = arith.select %34, %30, %35 : vector<8x8xi1>, vector<8x8xf32>
    %cst_33 = arith.constant dense<0xFF800000> : vector<8xf32>
    %37 = vector.multi_reduction <maximumf>, %36, %cst_33 [1] : vector<8x8xf32> to vector<8xf32>
    %38 = vector.shape_cast %37 : vector<8xf32> to vector<8x1xf32>
    %39 = vector.broadcast %38 : vector<8x1xf32> to vector<8x8xf32>
    %40 = arith.subf %36, %39 : vector<8x8xf32>
    %41 = math.exp %40 : vector<8x8xf32>
    %cst_34 = arith.constant dense<0.000000e+00> : vector<8xf32>
    %42 = vector.multi_reduction <add>, %41, %cst_34 [1] : vector<8x8xf32> to vector<8xf32>
    %43 = vector.shape_cast %42 : vector<8xf32> to vector<8x1xf32>
    %44 = vector.broadcast %43 : vector<8x1xf32> to vector<8x8xf32>
    %45 = arith.divf %41, %44 : vector<8x8xf32>
    %46 = arith.truncf %45 : vector<8x8xf32> to vector<8x8xbf16>
    %47 = vector.extract_strided_slice %29 {offsets = [0, 0], sizes = [8, 64], strides = [1, 1]} : vector<8x192xbf16> to vector<8x64xbf16>
    %cst_35 = arith.constant dense<0.000000e+00> : vector<8x64xf32>
    %48 = tpu.matmul %46, %47, %cst_35 {dimension_numbers = #tpu.dot_dimension_numbers<[1], [0], [0], [1], [0, 0, 1, 1], [], []>} : vector<8x8xbf16>, vector<8x64xbf16>, vector<8x64xf32> -> vector<8x64xf32>
    %49 = arith.truncf %48 : vector<8x64xf32> to vector<8x64xbf16>
    %c0_36 = arith.constant 0 : index
    %c0_37 = arith.constant 0 : index
    %50 = vector.load %arg12[%c0_36, %c0_37] : memref<8x192xbf16, #tpu.memory_space<vmem>>, vector<8x64xbf16>
    tpu.vector_store %arg12[%c0_36, %c0_37], %49 {strides = array<i32>} : memref<8x192xbf16, #tpu.memory_space<vmem>>, vector<8x64xbf16>,
    %51 = vector.extract_strided_slice %28 {offsets = [0, 8], sizes = [8, 8], strides = [1, 1]} : vector<8x24xf32> to vector<8x8xf32>
    %c1 = arith.constant 1 : index
    %c0_38 = arith.constant 0 : index
    %c0_39 = arith.constant 0 : index
    %52 = vector.load %arg8[%c1, %c0_38, %c0_39] : memref<3x8x8xf32, #tpu.memory_space<vmem>>, vector<1x8x8xf32>
    %53 = vector.shape_cast %52 : vector<1x8x8xf32> to vector<8x8xf32>
    %cst_40 = arith.constant 0.000000e+00 : f32
    %54 = vector.broadcast %cst_40 : f32 to vector<8x8xf32>
    %55 = arith.cmpf ogt, %53, %54 : vector<8x8xf32>
    %cst_41 = arith.constant -9.000000e+15 : f32
    %56 = vector.broadcast %cst_41 : f32 to vector<8x8xf32>
    %57 = arith.select %55, %51, %56 : vector<8x8xi1>, vector<8x8xf32>
    %cst_42 = arith.constant dense<0xFF800000> : vector<8xf32>
    %58 = vector.multi_reduction <maximumf>, %57, %cst_42 [1] : vector<8x8xf32> to vector<8xf32>
    %59 = vector.shape_cast %58 : vector<8xf32> to vector<8x1xf32>
    %60 = vector.broadcast %59 : vector<8x1xf32> to vector<8x8xf32>
    %61 = arith.subf %57, %60 : vector<8x8xf32>
    %62 = math.exp %61 : vector<8x8xf32>
    %cst_43 = arith.constant dense<0.000000e+00> : vector<8xf32>
    %63 = vector.multi_reduction <add>, %62, %cst_43 [1] : vector<8x8xf32> to vector<8xf32>
    %64 = vector.shape_cast %63 : vector<8xf32> to vector<8x1xf32>
    %65 = vector.broadcast %64 : vector<8x1xf32> to vector<8x8xf32>
    %66 = arith.divf %62, %65 : vector<8x8xf32>
    %67 = arith.truncf %66 : vector<8x8xf32> to vector<8x8xbf16>
    %68 = vector.extract_strided_slice %29 {offsets = [0, 64], sizes = [8, 64], strides = [1, 1]} : vector<8x192xbf16> to vector<8x64xbf16>
    %cst_44 = arith.constant dense<0.000000e+00> : vector<8x64xf32>
    %69 = tpu.matmul %67, %68, %cst_44 {dimension_numbers = #tpu.dot_dimension_numbers<[1], [0], [0], [1], [0, 0, 1, 1], [], []>} : vector<8x8xbf16>, vector<8x64xbf16>, vector<8x64xf32> -> vector<8x64xf32>
    %70 = arith.truncf %69 : vector<8x64xf32> to vector<8x64xbf16>
    %c0_45 = arith.constant 0 : index
    %c64 = arith.constant 64 : index
    %71 = vector.load %arg12[%c0_45, %c64] : memref<8x192xbf16, #tpu.memory_space<vmem>>, vector<8x64xbf16>
    tpu.vector_store %arg12[%c0_45, %c64], %70 {strides = array<i32>} : memref<8x192xbf16, #tpu.memory_space<vmem>>, vector<8x64xbf16>,
    %72 = vector.extract_strided_slice %28 {offsets = [0, 16], sizes = [8, 8], strides = [1, 1]} : vector<8x24xf32> to vector<8x8xf32>
    %c2 = arith.constant 2 : index
    %c0_46 = arith.constant 0 : index
    %c0_47 = arith.constant 0 : index
    %73 = vector.load %arg8[%c2, %c0_46, %c0_47] : memref<3x8x8xf32, #tpu.memory_space<vmem>>, vector<1x8x8xf32>
    %74 = vector.shape_cast %73 : vector<1x8x8xf32> to vector<8x8xf32>
    %cst_48 = arith.constant 0.000000e+00 : f32
    %75 = vector.broadcast %cst_48 : f32 to vector<8x8xf32>
    %76 = arith.cmpf ogt, %74, %75 : vector<8x8xf32>
    %cst_49 = arith.constant -9.000000e+15 : f32
    %77 = vector.broadcast %cst_49 : f32 to vector<8x8xf32>
    %78 = arith.select %76, %72, %77 : vector<8x8xi1>, vector<8x8xf32>
    %cst_50 = arith.constant dense<0xFF800000> : vector<8xf32>
    %79 = vector.multi_reduction <maximumf>, %78, %cst_50 [1] : vector<8x8xf32> to vector<8xf32>
    %80 = vector.shape_cast %79 : vector<8xf32> to vector<8x1xf32>
    %81 = vector.broadcast %80 : vector<8x1xf32> to vector<8x8xf32>
    %82 = arith.subf %78, %81 : vector<8x8xf32>
    %83 = math.exp %82 : vector<8x8xf32>
    %cst_51 = arith.constant dense<0.000000e+00> : vector<8xf32>
    %84 = vector.multi_reduction <add>, %83, %cst_51 [1] : vector<8x8xf32> to vector<8xf32>
    %85 = vector.shape_cast %84 : vector<8xf32> to vector<8x1xf32>
    %86 = vector.broadcast %85 : vector<8x1xf32> to vector<8x8xf32>
    %87 = arith.divf %83, %86 : vector<8x8xf32>
    %88 = arith.truncf %87 : vector<8x8xf32> to vector<8x8xbf16>
    %89 = vector.extract_strided_slice %29 {offsets = [0, 128], sizes = [8, 64], strides = [1, 1]} : vector<8x192xbf16> to vector<8x64xbf16>
    %cst_52 = arith.constant dense<0.000000e+00> : vector<8x64xf32>
    %90 = tpu.matmul %88, %89, %cst_52 {dimension_numbers = #tpu.dot_dimension_numbers<[1], [0], [0], [1], [0, 0, 1, 1], [], []>} : vector<8x8xbf16>, vector<8x64xbf16>, vector<8x64xf32> -> vector<8x64xf32>
    %91 = arith.truncf %90 : vector<8x64xf32> to vector<8x64xbf16>
    %c0_53 = arith.constant 0 : index
    %c128 = arith.constant 128 : index
    %92 = vector.load %arg12[%c0_53, %c128] : memref<8x192xbf16, #tpu.memory_space<vmem>>, vector<8x64xbf16>
    tpu.vector_store %arg12[%c0_53, %c128], %91 {strides = array<i32>} : memref<8x192xbf16, #tpu.memory_space<vmem>>, vector<8x64xbf16>,
    %c0_54 = arith.constant 0 : index
    %c0_55 = arith.constant 0 : index
    %93 = vector.load %arg12[%c0_54, %c0_55] : memref<8x192xbf16, #tpu.memory_space<vmem>>, vector<8x192xbf16>
    %c0_56 = arith.constant 0 : index
    %c0_57 = arith.constant 0 : index
    %94 = vector.load %arg9[%c0_56, %c0_57] : memref<192x64xbf16, #tpu.memory_space<vmem>>, vector<192x64xbf16>
    %cst_58 = arith.constant dense<0.000000e+00> : vector<8x64xf32>
    %95 = tpu.matmul %93, %94, %cst_58 {dimension_numbers = #tpu.dot_dimension_numbers<[1], [0], [0], [1], [0, 0, 1, 1], [], []>} : vector<8x192xbf16>, vector<192x64xbf16>, vector<8x64xf32> -> vector<8x64xf32>
    %c0_59 = arith.constant 0 : index
    %c0_60 = arith.constant 0 : index
    %96 = vector.load %arg10[%c0_59, %c0_60] : memref<1x64xf32, #tpu.memory_space<vmem>>, vector<1x64xf32>
    %97 = vector.broadcast %96 : vector<1x64xf32> to vector<8x64xf32>
    %98 = arith.addf %95, %97 : vector<8x64xf32>
    %cst_61 = arith.constant 0.000000e+00 : f32
    %99 = vector.broadcast %cst_61 : f32 to vector<8x64xf32>
    %100 = arith.cmpf ogt, %98, %99 : vector<8x64xf32>
    %cst_62 = arith.constant 0.00999999977 : f32
    %101 = vector.broadcast %cst_62 : f32 to vector<8x64xf32>
    %102 = arith.mulf %101, %98 : vector<8x64xf32>
    %103 = arith.select %100, %98, %102 : vector<8x64xi1>, vector<8x64xf32>
    %104 = arith.addf %103, %0 : vector<8x64xf32>
    %c0_63 = arith.constant 0 : index
    %c0_64 = arith.constant 0 : index
    %105 = vector.load %arg11[%c0_63, %c0_64] : memref<8x64xf32, #tpu.memory_space<vmem>>, vector<8x64xf32>
    tpu.vector_store %arg11[%c0_63, %c0_64], %104 {strides = array<i32>} : memref<8x64xf32, #tpu.memory_space<vmem>>, vector<8x64xf32>,
    return
  }
}

</mosaic_0001>

<llo_original>
// kernel: gat_layer_forward.1
$region0: #{gat_layer_forward.1}
  #allocation0 [shape = 'u32[]', space=smem, size = 0x4, offset = 0x4, fixed_abs, tag = 'smem constant byte address 0x4 - core index']
  #allocation1 [shape = 'u32[144,128]{1,0:T(1,128)}', space=vmem, size = 0x12000, scoped, tag = 'internal scratch']
  #allocation2 [shape = 'bf16[8,192]{1,0:T(8,128)(2,1)}', space=vmem, size = 0x1000, scoped, tag = 'scratch operand']
  %s0 = inlined_call_operand.vmem [shape: f32[8,64], index: 0, kind: input, shape index: {}]
  %s1 = inlined_call_operand.vmem [shape: bf16[64,192], index: 1, kind: input, shape index: {}]
  %s2 = inlined_call_operand.vmem [shape: f32[192,6], index: 2, kind: input, shape index: {}]
  %s3 = inlined_call_operand.vmem [shape: f32[8,64], index: 3, kind: input, shape index: {}]
  %s4 = inlined_call_operand.vmem [shape: f32[8,64], index: 4, kind: input, shape index: {}]
  %s5 = inlined_call_operand.vmem [shape: f32[64,8], index: 5, kind: input, shape index: {}]
  %s6 = inlined_call_operand.vmem [shape: f32[64,24], index: 6, kind: input, shape index: {}]
  %s7 = inlined_call_operand.vmem [shape: f32[3,24], index: 7, kind: input, shape index: {}]
  %s8 = inlined_call_operand.vmem [shape: f32[3,8,8], index: 8, kind: input, shape index: {}]
  %s9 = inlined_call_operand.vmem [shape: bf16[192,64], index: 9, kind: input, shape index: {}]
  %s10 = inlined_call_operand.vmem [shape: f32[1,64], index: 10, kind: input, shape index: {}]
  %s11 = inlined_call_operand.hbm [shape: f32[8,64], index: 11, kind: output, shape index: {}]
  %s12 = sld [smem:[#allocation0]]
  $region54: #{gat_layer_forward.1} parent=0
    _
  %s14 = ssub.s32 1, %s12
  %s15 = scalar_select 0, %s14, %s12
  $region1: #{gat_layer_forward.1} parent=0
    #allocation3 [shape = 'u8[4096]{0}', space=vmem, size = 0x1000, scoped, tag = 'output window, operand 0, single buffered']
    #allocation4 [shape = 's32[1]{0}', space=sflag, size = 0x4, scoped, tag = 'scoped memory for gat_layer_forward.1']
    %16 = vsyncpa [#allocation4], 0
    // Predicated region
    $region2: #{gat_layer_forward.1} parent=1 // pred_check
      _
    $region3: #{gat_layer_forward.1} parent=1 // pred_check_branch
      %18 = sbr.rel (0) target = $region5
    $region4: #{gat_layer_forward.1} parent=1 // pred_region
      _
    $region5: #{gat_layer_forward.1} parent=1 // pred_fallthru
      _
    // Predicated region
    $region6: #{gat_layer_forward.1} parent=1 // pred_check
      _
    $region7: #{gat_layer_forward.1} parent=1 // pred_check_branch
      %20 = sbr.rel (0) target = $region9
    $region8: #{gat_layer_forward.1} parent=1 // pred_region
      _
    $region9: #{gat_layer_forward.1} parent=1 // pred_fallthru
      _
    // Predicated region
    $region10: #{gat_layer_forward.1} parent=1 // pred_check
      _
    $region11: #{gat_layer_forward.1} parent=1 // pred_check_branch
      %22 = sbr.rel (0) target = $region13
    $region12: #{gat_layer_forward.1} parent=1 // pred_region
      _
    $region13: #{gat_layer_forward.1} parent=1 // pred_fallthru
      _
    // Predicated region
    $region14: #{gat_layer_forward.1} parent=1 // pred_check
      _
    $region15: #{gat_layer_forward.1} parent=1 // pred_check_branch
      %24 = sbr.rel (0) target = $region17
    $region16: #{gat_layer_forward.1} parent=1 // pred_region
      _
    $region17: #{gat_layer_forward.1} parent=1 // pred_fallthru
      _
    // Predicated region
    $region18: #{gat_layer_forward.1} parent=1 // pred_check
      _
    $region19: #{gat_layer_forward.1} parent=1 // pred_check_branch
      %26 = sbr.rel (0) target = $region21
    $region20: #{gat_layer_forward.1} parent=1 // pred_region
      _
    $region21: #{gat_layer_forward.1} parent=1 // pred_fallthru
      _
    // Predicated region
    $region22: #{gat_layer_forward.1} parent=1 // pred_check
      _
    $region23: #{gat_layer_forward.1} parent=1 // pred_check_branch
      %28 = sbr.rel (0) target = $region25
    $region24: #{gat_layer_forward.1} parent=1 // pred_region
      _
    $region25: #{gat_layer_forward.1} parent=1 // pred_fallthru
      _
    // Predicated region
    $region26: #{gat_layer_forward.1} parent=1 // pred_check
      _
    $region27: #{gat_layer_forward.1} parent=1 // pred_check_branch
      %30 = sbr.rel (0) target = $region29
    $region28: #{gat_layer_forward.1} parent=1 // pred_region
      _
    $region29: #{gat_layer_forward.1} parent=1 // pred_fallthru
      _
    // Predicated region
    $region30: #{gat_layer_forward.1} parent=1 // pred_check
      _
    $region31: #{gat_layer_forward.1} parent=1 // pred_check_branch
      %32 = sbr.rel (0) target = $region33
    $region32: #{gat_layer_forward.1} parent=1 // pred_region
      _
    $region33: #{gat_layer_forward.1} parent=1 // pred_fallthru
      _
    // Predicated region
    $region34: #{gat_layer_forward.1} parent=1 // pred_check
      _
    $region35: #{gat_layer_forward.1} parent=1 // pred_check_branch
      %34 = sbr.rel (0) target = $region37
    $region36: #{gat_layer_forward.1} parent=1 // pred_region
      _
    $region37: #{gat_layer_forward.1} parent=1 // pred_fallthru
      _
    // Predicated region
    $region38: #{gat_layer_forward.1} parent=1 // pred_check
      _
    $region39: #{gat_layer_forward.1} parent=1 // pred_check_branch
      %36 = sbr.rel (0) target = $region41
    $region40: #{gat_layer_forward.1} parent=1 // pred_region
      _
    $region41: #{gat_layer_forward.1} parent=1 // pred_fallthru
      _
    // Predicated region
    $region42: #{gat_layer_forward.1} parent=1 // pred_check
      _
    $region43: #{gat_layer_forward.1} parent=1 // pred_check_branch
      %38 = sbr.rel (0) target = $region45
    $region44: #{gat_layer_forward.1} parent=1 // pred_region
      _
    $region45: #{gat_layer_forward.1} parent=1 // pred_fallthru
      _
    %v40 = vld [vmem:[%s0] sm:$0xff]
    %v41 = vpack.c.bf16 %v40, %v40
    %v42 = vld [vmem:[%s1] sm:$0xff]
    %v43 = vld [vmem:[%s1 + $0x8] sm:$0xff]
    %v44 = vld [vmem:[%s1 + $0x10] sm:$0xff]
    %v45 = vld [vmem:[%s1 + $0x18] sm:$0xff]
    %v46 = vld [vmem:[%s1 + $0x20] sm:$0xff]
    %v47 = vld [vmem:[%s1 + $0x28] sm:$0xff]
    %v48 = vld [vmem:[%s1 + $0x30] sm:$0xff]
    %v49 = vld [vmem:[%s1 + $0x38] sm:$0xff]
    %v58 = vunpack.c.l.b16 %v42
    %v59 = vunpack.c.h.b16 %v42
    %v60 = vunpack.c.l.b16 %v43
    %v61 = vunpack.c.h.b16 %v43
    %v62 = vunpack.c.l.b16 %v44
    %v63 = vunpack.c.h.b16 %v44
    %v64 = vunpack.c.l.b16 %v45
    %v65 = vunpack.c.h.b16 %v45
    %v66 = vunpack.c.l.b16 %v46
    %v67 = vunpack.c.h.b16 %v46
    %v68 = vunpack.c.l.b16 %v47
    %v69 = vunpack.c.h.b16 %v47
    %v70 = vunpack.c.l.b16 %v48
    %v71 = vunpack.c.h.b16 %v48
    %v72 = vunpack.c.l.b16 %v49
    %v73 = vunpack.c.h.b16 %v49
    %v74 = vpack.c.b16 %v60, %v58
    %v75 = vpack.c.b16 %v61, %v59
    %v76 = vpack.c.b16 %v64, %v62
    %v77 = vpack.c.b16 %v65, %v63
    %v78 = vpack.c.b16 %v68, %v66
    %v79 = vpack.c.b16 %v69, %v67
    %v80 = vpack.c.b16 %v72, %v70
    %v81 = vpack.c.b16 %v73, %v71
    %vm90 = vcmask 523264
    %v92 = vsel %vm90, %v41, 0
    %94 = vmatprep.subr.bf16.mxu0 0
    %95 = vmatpush1.bf16.msra.mxu0 0
    %96 = vmatprep.subr.bf16.mxu0 0
    %97 = vmatpush1.bf16.msra.mxu0 0
    %98 = vmatprep.subr.bf16.mxu0 0
    %99 = vmatpush1.bf16.msra.mxu0 0
    %100 = vmatprep.subr.bf16.mxu0 0
    %101 = vmatpush1.bf16.msra.mxu0 0
    %102 = vmatprep.subr.bf16.mxu0 %v81
    %103 = vmatpush1.bf16.msra.mxu0 %v80
    %104 = vmatprep.subr.bf16.mxu0 %v79
    %105 = vmatpush1.bf16.msra.mxu0 %v78
    %106 = vmatprep.subr.bf16.mxu0 %v77
    %107 = vmatpush1.bf16.msra.mxu0 %v76
    %108 = vmatprep.subr.bf16.mxu0 %v75
    %109 = vmatpush1.bf16.msra.mxu0 %v74
    %110 = vmatprep.subr.bf16.mxu0 0
    %111 = vmatpush2.bf16.msra.mxu0 0
    %112 = vmatprep.subr.bf16.mxu0 0
    %113 = vmatpush2.bf16.msra.mxu0 0
    %114 = vmatprep.subr.bf16.mxu0 0
    %115 = vmatpush2.bf16.msra.mxu0 0
    %116 = vmatprep.subr.bf16.mxu0 0
    %117 = vmatpush2.bf16.msra.mxu0 0
    %118 = vmatprep.subr.bf16.mxu0 0
    %119 = vmatpush2.bf16.msra.mxu0 0
    %120 = vmatprep.subr.bf16.mxu0 0
    %121 = vmatpush2.bf16.msra.mxu0 0
    %122 = vmatprep.subr.bf16.mxu0 0
    %123 = vmatpush2.bf16.msra.mxu0 0
    %124 = vmatprep.subr.bf16.mxu0 0
    %125 = vmatpush2.bf16.msra.mxu0 0
    %126 = vmatprep.mubr.bf16.mxu0 0
    %127 = vmatmul.mubr.bf16.gmra.mxu0 %v92
    %v128 = vpop.f32.mrf.mxu0
    %v129 = vadd.f32 0.0, %v128
    %v130 = vpop.f32.mrf.mxu0
    %v131 = vadd.f32 0.0, %v130
    %v132 = vpop.f32.mrf.mxu0
    %v133 = vpop.f32.mrf.mxu0
    %134 = vdwg.mxu0
    %v135 = vld [vmem:[%s2] sm:$0xff]
    %v136 = vld [vmem:[%s2 + $0x8] sm:$0xff]
    %v137 = vld [vmem:[%s2 + $0x10] sm:$0xff]
    %v138 = vld [vmem:[%s2 + $0x18] sm:$0xff]
    %v139 = vld [vmem:[%s2 + $0x20] sm:$0xff]
    %v140 = vld [vmem:[%s2 + $0x28] sm:$0xff]
    %v141 = vld [vmem:[%s2 + $0x30] sm:$0xff]
    %v142 = vld [vmem:[%s2 + $0x38] sm:$0xff]
    %v143 = vld [vmem:[%s2 + $0x40] sm:$0xff]
    %v144 = vld [vmem:[%s2 + $0x48] sm:$0xff]
    %v145 = vld [vmem:[%s2 + $0x50] sm:$0xff]
    %v146 = vld [vmem:[%s2 + $0x58] sm:$0xff]
    %v147 = vld [vmem:[%s2 + $0x60] sm:$0xff]
    %v148 = vld [vmem:[%s2 + $0x68] sm:$0xff]
    %v149 = vld [vmem:[%s2 + $0x70] sm:$0xff]
    %v150 = vld [vmem:[%s2 + $0x78] sm:$0xff]
    %v151 = vld [vmem:[%s2 + $0x80] sm:$0xff]
    %v152 = vld [vmem:[%s2 + $0x88] sm:$0xff]
    %v153 = vld [vmem:[%s2 + $0x90] sm:$0xff]
    %v154 = vld [vmem:[%s2 + $0x98] sm:$0xff]
    %v155 = vld [vmem:[%s2 + $0xa0] sm:$0xff]
    %v156 = vld [vmem:[%s2 + $0xa8] sm:$0xff]
    %v157 = vld [vmem:[%s2 + $0xb0] sm:$0xff]
    %v158 = vld [vmem:[%s2 + $0xb8] sm:$0xff]
    %v160 = vsel %vm90, %v131, 0
    %162 = vmatprep.subr.mxu0 0.0
    %163 = vmatpush1.msra.mxu0 %v150
    %164 = vmatprep.subr.mxu0 0.0
    %165 = vmatpush1.msra.mxu0 %v149
    %166 = vmatprep.subr.mxu0 0.0
    %167 = vmatpush1.msra.mxu0 %v148
    %168 = vmatprep.subr.mxu0 0.0
    %169 = vmatpush1.msra.mxu0 %v147
    %170 = vmatprep.subr.mxu0 0.0
    %171 = vmatpush1.msra.mxu0 %v146
    %172 = vmatprep.subr.mxu0 0.0
    %173 = vmatpush1.msra.mxu0 %v145
    %174 = vmatprep.subr.mxu0 0.0
    %175 = vmatpush1.msra.mxu0 %v144
    %176 = vmatprep.subr.mxu0 0.0
    %177 = vmatpush1.msra.mxu0 %v143
    %178 = vmatprep.subr.mxu0 0.0
    %179 = vmatpush1.msra.mxu0 %v142
    %180 = vmatprep.subr.mxu0 0.0
    %181 = vmatpush1.msra.mxu0 %v141
    %182 = vmatprep.subr.mxu0 0.0
    %183 = vmatpush1.msra.mxu0 %v140
    %184 = vmatprep.subr.mxu0 0.0
    %185 = vmatpush1.msra.mxu0 %v139
    %186 = vmatprep.subr.mxu0 0.0
    %187 = vmatpush1.msra.mxu0 %v138
    %188 = vmatprep.subr.mxu0 0.0
    %189 = vmatpush1.msra.mxu0 %v137
    %190 = vmatprep.subr.mxu0 0.0
    %191 = vmatpush1.msra.mxu0 %v136
    %192 = vmatprep.subr.mxu0 0.0
    %193 = vmatpush1.msra.mxu0 %v135
    %194 = vmatprep.subr.mxu0 0.0
    %195 = vmatpush2.msra.mxu0 0.0
    %196 = vmatprep.subr.mxu0 0.0
    %197 = vmatpush2.msra.mxu0 0.0
    %198 = vmatprep.subr.mxu0 0.0
    %199 = vmatpush2.msra.mxu0 0.0
    %200 = vmatprep.subr.mxu0 0.0
    %201 = vmatpush2.msra.mxu0 0.0
    %202 = vmatprep.subr.mxu0 0.0
    %203 = vmatpush2.msra.mxu0 0.0
    %204 = vmatprep.subr.mxu0 0.0
    %205 = vmatpush2.msra.mxu0 0.0
    %206 = vmatprep.subr.mxu0 0.0
    %207 = vmatpush2.msra.mxu0 0.0
    %208 = vmatprep.subr.mxu0 0.0
    %209 = vmatpush2.msra.mxu0 0.0
    %210 = vmatprep.subr.mxu0 0.0
    %211 = vmatpush2.msra.mxu0 %v158
    %212 = vmatprep.subr.mxu0 0.0
    %213 = vmatpush2.msra.mxu0 %v157
    %214 = vmatprep.subr.mxu0 0.0
    %215 = vmatpush2.msra.mxu0 %v156
    %216 = vmatprep.subr.mxu0 0.0
    %217 = vmatpush2.msra.mxu0 %v155
    %218 = vmatprep.subr.mxu0 0.0
    %219 = vmatpush2.msra.mxu0 %v154
    %220 = vmatprep.subr.mxu0 0.0
    %221 = vmatpush2.msra.mxu0 %v153
    %222 = vmatprep.subr.mxu0 0.0
    %223 = vmatpush2.msra.mxu0 %v152
    %224 = vmatprep.subr.mxu0 0.0
    %225 = vmatpush2.msra.mxu0 %v151
    %226 = vmatprep.mubr.f32.mxu0 %v160
    %227 = vmatmul.mubr.f32.gmra.mxu0 %v129
    %v228 = vpop.f32.mrf.mxu0
    %v229 = vadd.f32 0.0, %v228
    %v230 = vpop.f32.mrf.mxu0
    %231 = vdwg.mxu0
    %v232 = vld [vmem:[%s6] sm:$0xff]
    %v233 = vld [vmem:[%s6 + $0x8] sm:$0xff]
    %v234 = vld [vmem:[%s6 + $0x10] sm:$0xff]
    %v235 = vld [vmem:[%s6 + $0x18] sm:$0xff]
    %v236 = vld [vmem:[%s6 + $0x20] sm:$0xff]
    %v237 = vld [vmem:[%s6 + $0x28] sm:$0xff]
    %v238 = vld [vmem:[%s6 + $0x30] sm:$0xff]
    %v239 = vld [vmem:[%s6 + $0x38] sm:$0xff]
    %v240 = vld [vmem:[%s5] sm:$0xff]
    %v241 = vld [vmem:[%s5 + $0x8] sm:$0xff]
    %v242 = vld [vmem:[%s5 + $0x10] sm:$0xff]
    %v243 = vld [vmem:[%s5 + $0x18] sm:$0xff]
    %v244 = vld [vmem:[%s5 + $0x20] sm:$0xff]
    %v245 = vld [vmem:[%s5 + $0x28] sm:$0xff]
    %v246 = vld [vmem:[%s5 + $0x30] sm:$0xff]
    %v247 = vld [vmem:[%s5 + $0x38] sm:$0xff]
    %v248 = vld [vmem:[%s7] sm:$0x7]
    %vm249 = vcmask 23552
    %v251 = vsel %vm249, %v229, 0
    %vm253 = vcmask 1042432
    %v255 = vsel %vm253, %v248, 0
    %257 = vmatprep.subr.mxu0 0.0
    %258 = vmatpush1.msra.mxu0 0.0
    %259 = vmatprep.subr.mxu0 0.0
    %260 = vmatpush1.msra.mxu0 0.0
    %261 = vmatprep.subr.mxu0 0.0
    %262 = vmatpush1.msra.mxu0 0.0
    %263 = vmatprep.subr.mxu0 0.0
    %264 = vmatpush1.msra.mxu0 0.0
    %265 = vmatprep.subr.mxu0 0.0
    %266 = vmatpush1.msra.mxu0 0.0
    %267 = vmatprep.subr.mxu0 0.0
    %268 = vmatpush1.msra.mxu0 0.0
    %269 = vmatprep.subr.mxu0 0.0
    %270 = vmatpush1.msra.mxu0 0.0
    %271 = vmatprep.subr.mxu0 0.0
    %272 = vmatpush1.msra.mxu0 0.0
    %273 = vmatprep.subr.mxu0 0.0
    %274 = vmatpush1.msra.mxu0 0.0
    %275 = vmatprep.subr.mxu0 0.0
    %276 = vmatpush1.msra.mxu0 0.0
    %277 = vmatprep.subr.mxu0 0.0
    %278 = vmatpush1.msra.mxu0 0.0
    %279 = vmatprep.subr.mxu0 0.0
    %280 = vmatpush1.msra.mxu0 0.0
    %281 = vmatprep.subr.mxu0 0.0
    %282 = vmatpush1.msra.mxu0 0.0
    %283 = vmatprep.subr.mxu0 0.0
    %284 = vmatpush1.msra.mxu0 0.0
    %285 = vmatprep.subr.mxu0 0.0
    %286 = vmatpush1.msra.mxu0 0.0
    %287 = vmatprep.subr.mxu0 0.0
    %288 = vmatpush1.msra.mxu0 %v255
    %289 = vmatprep.subr.mxu0 0.0
    %290 = vmatpush2.msra.mxu0 0.0
    %291 = vmatprep.subr.mxu0 0.0
    %292 = vmatpush2.msra.mxu0 0.0
    %293 = vmatprep.subr.mxu0 0.0
    %294 = vmatpush2.msra.mxu0 0.0
    %295 = vmatprep.subr.mxu0 0.0
    %296 = vmatpush2.msra.mxu0 0.0
    %297 = vmatprep.subr.mxu0 0.0
    %298 = vmatpush2.msra.mxu0 0.0
    %299 = vmatprep.subr.mxu0 0.0
    %300 = vmatpush2.msra.mxu0 0.0
    %301 = vmatprep.subr.mxu0 0.0
    %302 = vmatpush2.msra.mxu0 0.0
    %303 = vmatprep.subr.mxu0 0.0
    %304 = vmatpush2.msra.mxu0 0.0
    %305 = vmatprep.subr.mxu0 0.0
    %306 = vmatpush2.msra.mxu0 0.0
    %307 = vmatprep.subr.mxu0 0.0
    %308 = vmatpush2.msra.mxu0 0.0
    %309 = vmatprep.subr.mxu0 0.0
    %310 = vmatpush2.msra.mxu0 0.0
    %311 = vmatprep.subr.mxu0 0.0
    %312 = vmatpush2.msra.mxu0 0.0
    %313 = vmatprep.subr.mxu0 0.0
    %314 = vmatpush2.msra.mxu0 0.0
    %315 = vmatprep.subr.mxu0 0.0
    %316 = vmatpush2.msra.mxu0 0.0
    %317 = vmatprep.subr.mxu0 0.0
    %318 = vmatpush2.msra.mxu0 0.0
    %319 = vmatprep.subr.mxu0 0.0
    %320 = vmatpush2.msra.mxu0 0.0
    %321 = vmatprep.mubr.f32.mxu0 0.0
    %322 = vmatmul.mubr.f32.gmra.mxu0 %v251
    %v323 = vpop.f32.mrf.mxu0
    %v324 = vadd.f32 0.0, %v323
    %v325 = vpop.f32.mrf.mxu0
    %326 = vdwg.mxu0
    %vm327 = vcmask 64512
    %v329 = vsel %vm327, %v240, 0
    %v332 = vsel %vm327, %v241, 0
    %v335 = vsel %vm327, %v242, 0
    %v338 = vsel %vm327, %v243, 0
    %v341 = vsel %vm327, %v244, 0
    %v344 = vsel %vm327, %v245, 0
    %v347 = vsel %vm327, %v246, 0
    %v350 = vsel %vm327, %v247, 0
    %352 = vmatprep.subr.mxu0 0.0
    %353 = vmatpush1.msra.mxu0 0.0
    %354 = vmatprep.subr.mxu0 0.0
    %355 = vmatpush1.msra.mxu0 0.0
    %356 = vmatprep.subr.mxu0 0.0
    %357 = vmatpush1.msra.mxu0 0.0
    %358 = vmatprep.subr.mxu0 0.0
    %359 = vmatpush1.msra.mxu0 0.0
    %360 = vmatprep.subr.mxu0 0.0
    %361 = vmatpush1.msra.mxu0 0.0
    %362 = vmatprep.subr.mxu0 0.0
    %363 = vmatpush1.msra.mxu0 0.0
    %364 = vmatprep.subr.mxu0 0.0
    %365 = vmatpush1.msra.mxu0 0.0
    %366 = vmatprep.subr.mxu0 0.0
    %367 = vmatpush1.msra.mxu0 0.0
    %368 = vmatprep.subr.mxu0 0.0
    %369 = vmatpush1.msra.mxu0 0.0
    %370 = vmatprep.subr.mxu0 0.0
    %371 = vmatpush1.msra.mxu0 0.0
    %372 = vmatprep.subr.mxu0 0.0
    %373 = vmatpush1.msra.mxu0 0.0
    %374 = vmatprep.subr.mxu0 0.0
    %375 = vmatpush1.msra.mxu0 0.0
    %376 = vmatprep.subr.mxu0 0.0
    %377 = vmatpush1.msra.mxu0 0.0
    %378 = vmatprep.subr.mxu0 0.0
    %379 = vmatpush1.msra.mxu0 0.0
    %380 = vmatprep.subr.mxu0 0.0
    %381 = vmatpush1.msra.mxu0 0.0
    %382 = vmatprep.subr.mxu0 0.0
    %383 = vmatpush1.msra.mxu0 %v324
    %384 = vmatprep.subr.mxu0 0.0
    %385 = vmatpush2.msra.mxu0 0.0
    %386 = vmatprep.subr.mxu0 0.0
    %387 = vmatpush2.msra.mxu0 0.0
    %388 = vmatprep.subr.mxu0 0.0
    %389 = vmatpush2.msra.mxu0 0.0
    %390 = vmatprep.subr.mxu0 0.0
    %391 = vmatpush2.msra.mxu0 0.0
    %392 = vmatprep.subr.mxu0 0.0
    %393 = vmatpush2.msra.mxu0 0.0
    %394 = vmatprep.subr.mxu0 0.0
    %395 = vmatpush2.msra.mxu0 0.0
    %396 = vmatprep.subr.mxu0 0.0
    %397 = vmatpush2.msra.mxu0 0.0
    %398 = vmatprep.subr.mxu0 0.0
    %399 = vmatpush2.msra.mxu0 0.0
    %400 = vmatprep.subr.mxu0 0.0
    %401 = vmatpush2.msra.mxu0 0.0
    %402 = vmatprep.subr.mxu0 0.0
    %403 = vmatpush2.msra.mxu0 0.0
    %404 = vmatprep.subr.mxu0 0.0
    %405 = vmatpush2.msra.mxu0 0.0
    %406 = vmatprep.subr.mxu0 0.0
    %407 = vmatpush2.msra.mxu0 0.0
    %408 = vmatprep.subr.mxu0 0.0
    %409 = vmatpush2.msra.mxu0 0.0
    %410 = vmatprep.subr.mxu0 0.0
    %411 = vmatpush2.msra.mxu0 0.0
    %412 = vmatprep.subr.mxu0 0.0
    %413 = vmatpush2.msra.mxu0 0.0
    %414 = vmatprep.subr.mxu0 0.0
    %415 = vmatpush2.msra.mxu0 0.0
    %416 = vmatprep.mubr.f32.mxu0 0.0
    %417 = vmatmul.mubr.f32.gmra.mxu0 %v329
    %v418 = vpop.f32.mrf.mxu0
    %v419 = vadd.f32 0.0, %v418
    %v420 = vpop.f32.mrf.mxu0
    %421 = vmatprep.mubr.f32.mxu0 0.0
    %422 = vmatmul.mubr.f32.gmra.mxu0 %v332
    %v423 = vpop.f32.mrf.mxu0
    %v424 = vadd.f32 0.0, %v423
    %v425 = vpop.f32.mrf.mxu0
    %426 = vmatprep.mubr.f32.mxu0 0.0
    %427 = vmatmul.mubr.f32.gmra.mxu0 %v335
    %v428 = vpop.f32.mrf.mxu0
    %v429 = vadd.f32 0.0, %v428
    %v430 = vpop.f32.mrf.mxu0
    %431 = vmatprep.mubr.f32.mxu0 0.0
    %432 = vmatmul.mubr.f32.gmra.mxu0 %v338
    %v433 = vpop.f32.mrf.mxu0
    %v434 = vadd.f32 0.0, %v433
    %v435 = vpop.f32.mrf.mxu0
    %436 = vmatprep.mubr.f32.mxu0 0.0
    %437 = vmatmul.mubr.f32.gmra.mxu0 %v341
    %v438 = vpop.f32.mrf.mxu0
    %v439 = vadd.f32 0.0, %v438
    %v440 = vpop.f32.mrf.mxu0
    %441 = vmatprep.mubr.f32.mxu0 0.0
    %442 = vmatmul.mubr.f32.gmra.mxu0 %v344
    %v443 = vpop.f32.mrf.mxu0
    %v444 = vadd.f32 0.0, %v443
    %v445 = vpop.f32.mrf.mxu0
    %446 = vmatprep.mubr.f32.mxu0 0.0
    %447 = vmatmul.mubr.f32.gmra.mxu0 %v347
    %v448 = vpop.f32.mrf.mxu0
    %v449 = vadd.f32 0.0, %v448
    %v450 = vpop.f32.mrf.mxu0
    %451 = vmatprep.mubr.f32.mxu0 0.0
    %452 = vmatmul.mubr.f32.gmra.mxu0 %v350
    %v453 = vpop.f32.mrf.mxu0
    %v454 = vadd.f32 0.0, %v453
    %v455 = vpop.f32.mrf.mxu0
    %456 = vdwg.mxu0
    %v457 = vmul.f32 %v419, %v232
    %v458 = vmul.f32 %v424, %v233
    %v459 = vmul.f32 %v429, %v234
    %v460 = vmul.f32 %v434, %v235
    %v461 = vmul.f32 %v439, %v236
    %v462 = vmul.f32 %v444, %v237
    %v463 = vmul.f32 %v449, %v238
    %v464 = vmul.f32 %v454, %v239
    %465 = vrot.lane.b32.xlu0 %v229, 125
    %v466 = vpop.permute.xlu0 %465
    %v467 = vsel %vm249, %v466, 0
    %469 = vmatprep.subr.mxu0 0.0
    %470 = vmatpush1.msra.mxu0 0.0
    %471 = vmatprep.subr.mxu0 0.0
    %472 = vmatpush1.msra.mxu0 0.0
    %473 = vmatprep.subr.mxu0 0.0
    %474 = vmatpush1.msra.mxu0 0.0
    %475 = vmatprep.subr.mxu0 0.0
    %476 = vmatpush1.msra.mxu0 0.0
    %477 = vmatprep.subr.mxu0 0.0
    %478 = vmatpush1.msra.mxu0 0.0
    %479 = vmatprep.subr.mxu0 0.0
    %480 = vmatpush1.msra.mxu0 0.0
    %481 = vmatprep.subr.mxu0 0.0
    %482 = vmatpush1.msra.mxu0 0.0
    %483 = vmatprep.subr.mxu0 0.0
    %484 = vmatpush1.msra.mxu0 0.0
    %485 = vmatprep.subr.mxu0 0.0
    %486 = vmatpush1.msra.mxu0 0.0
    %487 = vmatprep.subr.mxu0 0.0
    %488 = vmatpush1.msra.mxu0 0.0
    %489 = vmatprep.subr.mxu0 0.0
    %490 = vmatpush1.msra.mxu0 0.0
    %491 = vmatprep.subr.mxu0 0.0
    %492 = vmatpush1.msra.mxu0 0.0
    %493 = vmatprep.subr.mxu0 0.0
    %494 = vmatpush1.msra.mxu0 0.0
    %495 = vmatprep.subr.mxu0 0.0
    %496 = vmatpush1.msra.mxu0 0.0
    %497 = vmatprep.subr.mxu0 0.0
    %498 = vmatpush1.msra.mxu0 0.0
    %499 = vmatprep.subr.mxu0 0.0
    %500 = vmatpush1.msra.mxu0 %v255
    %501 = vmatprep.subr.mxu0 0.0
    %502 = vmatpush2.msra.mxu0 0.0
    %503 = vmatprep.subr.mxu0 0.0
    %504 = vmatpush2.msra.mxu0 0.0
    %505 = vmatprep.subr.mxu0 0.0
    %506 = vmatpush2.msra.mxu0 0.0
    %507 = vmatprep.subr.mxu0 0.0
    %508 = vmatpush2.msra.mxu0 0.0
    %509 = vmatprep.subr.mxu0 0.0
    %510 = vmatpush2.msra.mxu0 0.0
    %511 = vmatprep.subr.mxu0 0.0
    %512 = vmatpush2.msra.mxu0 0.0
    %513 = vmatprep.subr.mxu0 0.0
    %514 = vmatpush2.msra.mxu0 0.0
    %515 = vmatprep.subr.mxu0 0.0
    %516 = vmatpush2.msra.mxu0 0.0
    %517 = vmatprep.subr.mxu0 0.0
    %518 = vmatpush2.msra.mxu0 0.0
    %519 = vmatprep.subr.mxu0 0.0
    %520 = vmatpush2.msra.mxu0 0.0
    %521 = vmatprep.subr.mxu0 0.0
    %522 = vmatpush2.msra.mxu0 0.0
    %523 = vmatprep.subr.mxu0 0.0
    %524 = vmatpush2.msra.mxu0 0.0
    %525 = vmatprep.subr.mxu0 0.0
    %526 = vmatpush2.msra.mxu0 0.0
    %527 = vmatprep.subr.mxu0 0.0
    %528 = vmatpush2.msra.mxu0 0.0
    %529 = vmatprep.subr.mxu0 0.0
    %530 = vmatpush2.msra.mxu0 0.0
    %531 = vmatprep.subr.mxu0 0.0
    %532 = vmatpush2.msra.mxu0 0.0
    %533 = vmatprep.mubr.f32.mxu0 0.0
    %534 = vmatmul.mubr.f32.gmra.mxu0 %v467
    %v535 = vpop.f32.mrf.mxu0
    %v536 = vadd.f32 0.0, %v535
    %v537 = vpop.f32.mrf.mxu0
    %538 = vdwg.mxu0
    %539 = vmatprep.subr.mxu0 0.0
    %540 = vmatpush1.msra.mxu0 0.0
    %541 = vmatprep.subr.mxu0 0.0
    %542 = vmatpush1.msra.mxu0 0.0
    %543 = vmatprep.subr.mxu0 0.0
    %544 = vmatpush1.msra.mxu0 0.0
    %545 = vmatprep.subr.mxu0 0.0
    %546 = vmatpush1.msra.mxu0 0.0
    %547 = vmatprep.subr.mxu0 0.0
    %548 = vmatpush1.msra.mxu0 0.0
    %549 = vmatprep.subr.mxu0 0.0
    %550 = vmatpush1.msra.mxu0 0.0
    %551 = vmatprep.subr.mxu0 0.0
    %552 = vmatpush1.msra.mxu0 0.0
    %553 = vmatprep.subr.mxu0 0.0
    %554 = vmatpush1.msra.mxu0 0.0
    %555 = vmatprep.subr.mxu0 0.0
    %556 = vmatpush1.msra.mxu0 0.0
    %557 = vmatprep.subr.mxu0 0.0
    %558 = vmatpush1.msra.mxu0 0.0
    %559 = vmatprep.subr.mxu0 0.0
    %560 = vmatpush1.msra.mxu0 0.0
    %561 = vmatprep.subr.mxu0 0.0
    %562 = vmatpush1.msra.mxu0 0.0
    %563 = vmatprep.subr.mxu0 0.0
    %564 = vmatpush1.msra.mxu0 0.0
    %565 = vmatprep.subr.mxu0 0.0
    %566 = vmatpush1.msra.mxu0 0.0
    %567 = vmatprep.subr.mxu0 0.0
    %568 = vmatpush1.msra.mxu0 0.0
    %569 = vmatprep.subr.mxu0 0.0
    %570 = vmatpush1.msra.mxu0 %v536
    %571 = vmatprep.subr.mxu0 0.0
    %572 = vmatpush2.msra.mxu0 0.0
    %573 = vmatprep.subr.mxu0 0.0
    %574 = vmatpush2.msra.mxu0 0.0
    %575 = vmatprep.subr.mxu0 0.0
    %576 = vmatpush2.msra.mxu0 0.0
    %577 = vmatprep.subr.mxu0 0.0
    %578 = vmatpush2.msra.mxu0 0.0
    %579 = vmatprep.subr.mxu0 0.0
    %580 = vmatpush2.msra.mxu0 0.0
    %581 = vmatprep.subr.mxu0 0.0
    %582 = vmatpush2.msra.mxu0 0.0
    %583 = vmatprep.subr.mxu0 0.0
    %584 = vmatpush2.msra.mxu0 0.0
    %585 = vmatprep.subr.mxu0 0.0
    %586 = vmatpush2.msra.mxu0 0.0
    %587 = vmatprep.subr.mxu0 0.0
    %588 = vmatpush2.msra.mxu0 0.0
    %589 = vmatprep.subr.mxu0 0.0
    %590 = vmatpush2.msra.mxu0 0.0
    %591 = vmatprep.subr.mxu0 0.0
    %592 = vmatpush2.msra.mxu0 0.0
    %593 = vmatprep.subr.mxu0 0.0
    %594 = vmatpush2.msra.mxu0 0.0
    %595 = vmatprep.subr.mxu0 0.0
    %596 = vmatpush2.msra.mxu0 0.0
    %597 = vmatprep.subr.mxu0 0.0
    %598 = vmatpush2.msra.mxu0 0.0
    %599 = vmatprep.subr.mxu0 0.0
    %600 = vmatpush2.msra.mxu0 0.0
    %601 = vmatprep.subr.mxu0 0.0
    %602 = vmatpush2.msra.mxu0 0.0
    %603 = vmatprep.mubr.f32.mxu0 0.0
    %604 = vmatmul.mubr.f32.gmra.mxu0 %v329
    %v605 = vpop.f32.mrf.mxu0
    %v606 = vadd.f32 0.0, %v605
    %v607 = vpop.f32.mrf.mxu0
    %608 = vmatprep.mubr.f32.mxu0 0.0
    %609 = vmatmul.mubr.f32.gmra.mxu0 %v332
    %v610 = vpop.f32.mrf.mxu0
    %v611 = vadd.f32 0.0, %v610
    %v612 = vpop.f32.mrf.mxu0
    %613 = vmatprep.mubr.f32.mxu0 0.0
    %614 = vmatmul.mubr.f32.gmra.mxu0 %v335
    %v615 = vpop.f32.mrf.mxu0
    %v616 = vadd.f32 0.0, %v615
    %v617 = vpop.f32.mrf.mxu0
    %618 = vmatprep.mubr.f32.mxu0 0.0
    %619 = vmatmul.mubr.f32.gmra.mxu0 %v338
    %v620 = vpop.f32.mrf.mxu0
    %v621 = vadd.f32 0.0, %v620
    %v622 = vpop.f32.mrf.mxu0
    %623 = vmatprep.mubr.f32.mxu0 0.0
    %624 = vmatmul.mubr.f32.gmra.mxu0 %v341
    %v625 = vpop.f32.mrf.mxu0
    %v626 = vadd.f32 0.0, %v625
    %v627 = vpop.f32.mrf.mxu0
    %628 = vmatprep.mubr.f32.mxu0 0.0
    %629 = vmatmul.mubr.f32.gmra.mxu0 %v344
    %v630 = vpop.f32.mrf.mxu0
    %v631 = vadd.f32 0.0, %v630
    %v632 = vpop.f32.mrf.mxu0
    %633 = vmatprep.mubr.f32.mxu0 0.0
    %634 = vmatmul.mubr.f32.gmra.mxu0 %v347
    %v635 = vpop.f32.mrf.mxu0
    %v636 = vadd.f32 0.0, %v635
    %v637 = vpop.f32.mrf.mxu0
    %638 = vmatprep.mubr.f32.mxu0 0.0
    %639 = vmatmul.mubr.f32.gmra.mxu0 %v350
    %v640 = vpop.f32.mrf.mxu0
    %v641 = vadd.f32 0.0, %v640
    %v642 = vpop.f32.mrf.mxu0
    %643 = vdwg.mxu0
    %v644 = vmul.f32 %v606, %v232
    %v645 = vmul.f32 %v611, %v233
    %v646 = vmul.f32 %v616, %v234
    %v647 = vmul.f32 %v621, %v235
    %v648 = vmul.f32 %v626, %v236
    %v649 = vmul.f32 %v631, %v237
    %v650 = vmul.f32 %v636, %v238
    %v651 = vmul.f32 %v641, %v239
    %v652 = vld [vmem:[%s3] sm:$0xff]
    %v653 = vld [vmem:[%s4] sm:$0xff]
    %v655 = vsel %vm90, %v653, 0
    %657 = vmatprep.subr.mxu0 0.0
    %658 = vmatpush1.msra.mxu0 0.0
    %659 = vmatprep.subr.mxu0 0.0
    %660 = vmatpush1.msra.mxu0 0.0
    %661 = vmatprep.subr.mxu0 0.0
    %662 = vmatpush1.msra.mxu0 0.0
    %663 = vmatprep.subr.mxu0 0.0
    %664 = vmatpush1.msra.mxu0 0.0
    %665 = vmatprep.subr.mxu0 0.0
    %666 = vmatpush1.msra.mxu0 0.0
    %667 = vmatprep.subr.mxu0 0.0
    %668 = vmatpush1.msra.mxu0 0.0
    %669 = vmatprep.subr.mxu0 0.0
    %670 = vmatpush1.msra.mxu0 0.0
    %671 = vmatprep.subr.mxu0 0.0
    %672 = vmatpush1.msra.mxu0 0.0
    %673 = vmatprep.subr.mxu0 0.0
    %674 = vmatpush1.msra.mxu0 %v651
    %675 = vmatprep.subr.mxu0 0.0
    %676 = vmatpush1.msra.mxu0 %v650
    %677 = vmatprep.subr.mxu0 0.0
    %678 = vmatpush1.msra.mxu0 %v649
    %679 = vmatprep.subr.mxu0 0.0
    %680 = vmatpush1.msra.mxu0 %v648
    %681 = vmatprep.subr.mxu0 0.0
    %682 = vmatpush1.msra.mxu0 %v647
    %683 = vmatprep.subr.mxu0 0.0
    %684 = vmatpush1.msra.mxu0 %v646
    %685 = vmatprep.subr.mxu0 0.0
    %686 = vmatpush1.msra.mxu0 %v645
    %687 = vmatprep.subr.mxu0 0.0
    %688 = vmatpush1.msra.mxu0 %v644
    %689 = vmatprep.subr.mxu0 0.0
    %690 = vmatpush2.msra.mxu0 0.0
    %691 = vmatprep.subr.mxu0 0.0
    %692 = vmatpush2.msra.mxu0 0.0
    %693 = vmatprep.subr.mxu0 0.0
    %694 = vmatpush2.msra.mxu0 0.0
    %695 = vmatprep.subr.mxu0 0.0
    %696 = vmatpush2.msra.mxu0 0.0
    %697 = vmatprep.subr.mxu0 0.0
    %698 = vmatpush2.msra.mxu0 0.0
    %699 = vmatprep.subr.mxu0 0.0
    %700 = vmatpush2.msra.mxu0 0.0
    %701 = vmatprep.subr.mxu0 0.0
    %702 = vmatpush2.msra.mxu0 0.0
    %703 = vmatprep.subr.mxu0 0.0
    %704 = vmatpush2.msra.mxu0 0.0
    %705 = vmatprep.subr.mxu0 0.0
    %706 = vmatpush2.msra.mxu0 0.0
    %707 = vmatprep.subr.mxu0 0.0
    %708 = vmatpush2.msra.mxu0 0.0
    %709 = vmatprep.subr.mxu0 0.0
    %710 = vmatpush2.msra.mxu0 0.0
    %711 = vmatprep.subr.mxu0 0.0
    %712 = vmatpush2.msra.mxu0 0.0
    %713 = vmatprep.subr.mxu0 0.0
    %714 = vmatpush2.msra.mxu0 0.0
    %715 = vmatprep.subr.mxu0 0.0
    %716 = vmatpush2.msra.mxu0 0.0
    %717 = vmatprep.subr.mxu0 0.0
    %718 = vmatpush2.msra.mxu0 0.0
    %719 = vmatprep.subr.mxu0 0.0
    %720 = vmatpush2.msra.mxu0 0.0
    %721 = vmatprep.mubr.f32.mxu0 0.0
    %722 = vmatmul.mubr.f32.gmra.mxu0 %v655
    %v723 = vpop.f32.mrf.mxu0
    %v724 = vadd.f32 0.0, %v723
    %v725 = vpop.f32.mrf.mxu0
    %726 = vdwg.mxu0
    %v728 = vsel %vm90, %v652, 0
    %730 = vmatprep.subr.mxu0 0.0
    %731 = vmatpush1.msra.mxu0 0.0
    %732 = vmatprep.subr.mxu0 0.0
    %733 = vmatpush1.msra.mxu0 0.0
    %734 = vmatprep.subr.mxu0 0.0
    %735 = vmatpush1.msra.mxu0 0.0
    %736 = vmatprep.subr.mxu0 0.0
    %737 = vmatpush1.msra.mxu0 0.0
    %738 = vmatprep.subr.mxu0 0.0
    %739 = vmatpush1.msra.mxu0 0.0
    %740 = vmatprep.subr.mxu0 0.0
    %741 = vmatpush1.msra.mxu0 0.0
    %742 = vmatprep.subr.mxu0 0.0
    %743 = vmatpush1.msra.mxu0 0.0
    %744 = vmatprep.subr.mxu0 0.0
    %745 = vmatpush1.msra.mxu0 0.0
    %746 = vmatprep.subr.mxu0 0.0
    %747 = vmatpush1.msra.mxu0 %v464
    %748 = vmatprep.subr.mxu0 0.0
    %749 = vmatpush1.msra.mxu0 %v463
    %750 = vmatprep.subr.mxu0 0.0
    %751 = vmatpush1.msra.mxu0 %v462
    %752 = vmatprep.subr.mxu0 0.0
    %753 = vmatpush1.msra.mxu0 %v461
    %754 = vmatprep.subr.mxu0 0.0
    %755 = vmatpush1.msra.mxu0 %v460
    %756 = vmatprep.subr.mxu0 0.0
    %757 = vmatpush1.msra.mxu0 %v459
    %758 = vmatprep.subr.mxu0 0.0
    %759 = vmatpush1.msra.mxu0 %v458
    %760 = vmatprep.subr.mxu0 0.0
    %761 = vmatpush1.msra.mxu0 %v457
    %762 = vmatprep.subr.mxu0 0.0
    %763 = vmatpush2.msra.mxu0 0.0
    %764 = vmatprep.subr.mxu0 0.0
    %765 = vmatpush2.msra.mxu0 0.0
    %766 = vmatprep.subr.mxu0 0.0
    %767 = vmatpush2.msra.mxu0 0.0
    %768 = vmatprep.subr.mxu0 0.0
    %769 = vmatpush2.msra.mxu0 0.0
    %770 = vmatprep.subr.mxu0 0.0
    %771 = vmatpush2.msra.mxu0 0.0
    %772 = vmatprep.subr.mxu0 0.0
    %773 = vmatpush2.msra.mxu0 0.0
    %774 = vmatprep.subr.mxu0 0.0
    %775 = vmatpush2.msra.mxu0 0.0
    %776 = vmatprep.subr.mxu0 0.0
    %777 = vmatpush2.msra.mxu0 0.0
    %778 = vmatprep.subr.mxu0 0.0
    %779 = vmatpush2.msra.mxu0 0.0
    %780 = vmatprep.subr.mxu0 0.0
    %781 = vmatpush2.msra.mxu0 0.0
    %782 = vmatprep.subr.mxu0 0.0
    %783 = vmatpush2.msra.mxu0 0.0
    %784 = vmatprep.subr.mxu0 0.0
    %785 = vmatpush2.msra.mxu0 0.0
    %786 = vmatprep.subr.mxu0 0.0
    %787 = vmatpush2.msra.mxu0 0.0
    %788 = vmatprep.subr.mxu0 0.0
    %789 = vmatpush2.msra.mxu0 0.0
    %790 = vmatprep.subr.mxu0 0.0
    %791 = vmatpush2.msra.mxu0 0.0
    %792 = vmatprep.subr.mxu0 0.0
    %793 = vmatpush2.msra.mxu0 0.0
    %794 = vmatprep.mubr.f32.mxu0 0.0
    %795 = vmatmul.mubr.f32.gmra.mxu0 %v728
    %v796 = vpop.f32.mrf.mxu0
    %v797 = vadd.f32 %v724, %v796
    %v798 = vpop.f32.mrf.mxu0
    %799 = vdwg.mxu0
    %vm800 = vcmp.gt.f32.partialorder %v797, 0.0
    %v801 = vmul.f32 %v797, 0.01
    %v802 = vsel %vm800, %v797, %v801
    %v803 = vpack.c.bf16 %v129, %v129
    %v804 = vpack.c.bf16 %v131, %v131
    %v805 = vld [vmem:[%s8] sm:$0xff]
    %vm806 = vcmp.gt.f32.partialorder %v805, 0.0
    %v807 = vsel %vm806, %v802, -9e+15
    %v808 = vsel %vm327, %v807, -inf
    %809 = vmax.xlane.f32.xlu0 %v808
    %v810 = vpop.xlane.xlu0 %809
    %v811 = vsub.f32 %v807, %v810
    %v812 = vmul.f32 %v811, 1.442695
    %v813 = vpow.pop %v812
    %v814 = vsel %vm327, %v813, 0.0
    %815 = vadd.xlane.f32.xlu0 %v814
    %v816 = vpop.xlane.xlu0 %815
    %v817 = vrcp.pop %v816
    %v818 = vmul.f32 %v813, %v817
    %v819 = vpack.c.bf16 %v818, %v818
    %v821 = vsel %vm327, %v819, 0
    %vm823 = vcmask 1043456
    %v825 = vsel %vm823, %v803, 0
    %827 = vmatprep.subr.bf16.mxu0 0
    %828 = vmatpush1.bf16.msra.mxu0 0
    %829 = vmatprep.subr.bf16.mxu0 0
    %830 = vmatpush1.bf16.msra.mxu0 0
    %831 = vmatprep.subr.bf16.mxu0 0
    %832 = vmatpush1.bf16.msra.mxu0 0
    %833 = vmatprep.subr.bf16.mxu0 0
    %834 = vmatpush1.bf16.msra.mxu0 0
    %835 = vmatprep.subr.bf16.mxu0 0
    %836 = vmatpush1.bf16.msra.mxu0 0
    %837 = vmatprep.subr.bf16.mxu0 0
    %838 = vmatpush1.bf16.msra.mxu0 0
    %839 = vmatprep.subr.bf16.mxu0 0
    %840 = vmatpush1.bf16.msra.mxu0 0
    %841 = vmatprep.subr.bf16.mxu0 0
    %842 = vmatpush1.bf16.msra.mxu0 %v825
    %843 = vmatprep.subr.bf16.mxu0 0
    %844 = vmatpush2.bf16.msra.mxu0 0
    %845 = vmatprep.subr.bf16.mxu0 0
    %846 = vmatpush2.bf16.msra.mxu0 0
    %847 = vmatprep.subr.bf16.mxu0 0
    %848 = vmatpush2.bf16.msra.mxu0 0
    %849 = vmatprep.subr.bf16.mxu0 0
    %850 = vmatpush2.bf16.msra.mxu0 0
    %851 = vmatprep.subr.bf16.mxu0 0
    %852 = vmatpush2.bf16.msra.mxu0 0
    %853 = vmatprep.subr.bf16.mxu0 0
    %854 = vmatpush2.bf16.msra.mxu0 0
    %855 = vmatprep.subr.bf16.mxu0 0
    %856 = vmatpush2.bf16.msra.mxu0 0
    %857 = vmatprep.subr.bf16.mxu0 0
    %858 = vmatpush2.bf16.msra.mxu0 0
    %859 = vmatprep.mubr.bf16.mxu0 0
    %860 = vmatmul.mubr.bf16.gmra.mxu0 %v821
    %v861 = vpop.f32.mrf.mxu0
    %v862 = vadd.f32 0.0, %v861
    %v863 = vpop.f32.mrf.mxu0
    %v864 = vpop.f32.mrf.mxu0
    %v865 = vpop.f32.mrf.mxu0
    %866 = vdwg.mxu0
    %v867 = vpack.c.bf16 %v862, %v862
    %vm868 = vcmask 519168
    %869 = vst.msk [vmem:[#allocation2] sm:$0xf] %vm868, %v867
    %s870 = scalar_lea.vmem %s8, 8
    %v871 = vld [vmem:[%s870] sm:$0xff]
    %vm872 = vcmp.gt.f32.partialorder %v871, 0.0
    %874 = vrot.lane.b32.xlu0 %v802, 120
    %v875 = vpop.permute.xlu0 %874
    %v877 = vsel %vm872, %v875, -9e+15
    %v878 = vsel %vm327, %v877, -inf
    %879 = vmax.xlane.f32.xlu0 %v878
    %v880 = vpop.xlane.xlu0 %879
    %v881 = vsub.f32 %v877, %v880
    %v882 = vmul.f32 %v881, 1.442695
    %v883 = vpow.pop %v882
    %v884 = vsel %vm327, %v883, 0.0
    %885 = vadd.xlane.f32.xlu0 %v884
    %v886 = vpop.xlane.xlu0 %885
    %v887 = vrcp.pop %v886
    %v888 = vmul.f32 %v883, %v887
    %v889 = vpack.c.bf16 %v888, %v888
    %891 = vrot.lane.b32.xlu0 %v803, 64
    %v892 = vpop.permute.xlu0 %891
    %v894 = vsel %vm327, %v889, 0
    %v897 = vsel %vm823, %v892, 0
    %899 = vmatprep.subr.bf16.mxu0 0
    %900 = vmatpush1.bf16.msra.mxu0 0
    %901 = vmatprep.subr.bf16.mxu0 0
    %902 = vmatpush1.bf16.msra.mxu0 0
    %903 = vmatprep.subr.bf16.mxu0 0
    %904 = vmatpush1.bf16.msra.mxu0 0
    %905 = vmatprep.subr.bf16.mxu0 0
    %906 = vmatpush1.bf16.msra.mxu0 0
    %907 = vmatprep.subr.bf16.mxu0 0
    %908 = vmatpush1.bf16.msra.mxu0 0
    %909 = vmatprep.subr.bf16.mxu0 0
    %910 = vmatpush1.bf16.msra.mxu0 0
    %911 = vmatprep.subr.bf16.mxu0 0
    %912 = vmatpush1.bf16.msra.mxu0 0
    %913 = vmatprep.subr.bf16.mxu0 0
    %914 = vmatpush1.bf16.msra.mxu0 %v897
    %915 = vmatprep.subr.bf16.mxu0 0
    %916 = vmatpush2.bf16.msra.mxu0 0
    %917 = vmatprep.subr.bf16.mxu0 0
    %918 = vmatpush2.bf16.msra.mxu0 0
    %919 = vmatprep.subr.bf16.mxu0 0
    %920 = vmatpush2.bf16.msra.mxu0 0
    %921 = vmatprep.subr.bf16.mxu0 0
    %922 = vmatpush2.bf16.msra.mxu0 0
    %923 = vmatprep.subr.bf16.mxu0 0
    %924 = vmatpush2.bf16.msra.mxu0 0
    %925 = vmatprep.subr.bf16.mxu0 0
    %926 = vmatpush2.bf16.msra.mxu0 0
    %927 = vmatprep.subr.bf16.mxu0 0
    %928 = vmatpush2.bf16.msra.mxu0 0
    %929 = vmatprep.subr.bf16.mxu0 0
    %930 = vmatpush2.bf16.msra.mxu0 0
    %931 = vmatprep.mubr.bf16.mxu0 0
    %932 = vmatmul.mubr.bf16.gmra.mxu0 %v894
    %v933 = vpop.f32.mrf.mxu0
    %v934 = vadd.f32 0.0, %v933
    %v935 = vpop.f32.mrf.mxu0
    %v936 = vpop.f32.mrf.mxu0
    %v937 = vpop.f32.mrf.mxu0
    %938 = vdwg.mxu0
    %v939 = vpack.c.bf16 %v934, %v934
    %v941 = vunpack.c.l.b16 %v939
    %v942 = vpack.c.b16 %v941, %v941
    %943 = vrot.lane.b32.xlu0 %v942, 64
    %v944 = vpop.permute.xlu0 %943
    %vm946 = vcmask 1043968
    %947 = vst.msk [vmem:[#allocation2] sm:$0xf] %vm946, %v944
    %s948 = scalar_lea.vmem %s8, 16
    %v949 = vld [vmem:[%s948] sm:$0xff]
    %vm950 = vcmp.gt.f32.partialorder %v949, 0.0
    %951 = vrot.lane.b32.xlu0 %v802, 112
    %v952 = vpop.permute.xlu0 %951
    %v954 = vsel %vm950, %v952, -9e+15
    %v955 = vsel %vm327, %v954, -inf
    %956 = vmax.xlane.f32.xlu0 %v955
    %v957 = vpop.xlane.xlu0 %956
    %v958 = vsub.f32 %v954, %v957
    %v959 = vmul.f32 %v958, 1.442695
    %v960 = vpow.pop %v959
    %v961 = vsel %vm327, %v960, 0.0
    %962 = vadd.xlane.f32.xlu0 %v961
    %v963 = vpop.xlane.xlu0 %962
    %v964 = vrcp.pop %v963
    %v965 = vmul.f32 %v960, %v964
    %v966 = vpack.c.bf16 %v965, %v965
    %v968 = vsel %vm327, %v966, 0
    %v971 = vsel %vm823, %v804, 0
    %973 = vmatprep.subr.bf16.mxu0 0
    %974 = vmatpush1.bf16.msra.mxu0 0
    %975 = vmatprep.subr.bf16.mxu0 0
    %976 = vmatpush1.bf16.msra.mxu0 0
    %977 = vmatprep.subr.bf16.mxu0 0
    %978 = vmatpush1.bf16.msra.mxu0 0
    %979 = vmatprep.subr.bf16.mxu0 0
    %980 = vmatpush1.bf16.msra.mxu0 0
    %981 = vmatprep.subr.bf16.mxu0 0
    %982 = vmatpush1.bf16.msra.mxu0 0
    %983 = vmatprep.subr.bf16.mxu0 0
    %984 = vmatpush1.bf16.msra.mxu0 0
    %985 = vmatprep.subr.bf16.mxu0 0
    %986 = vmatpush1.bf16.msra.mxu0 0
    %987 = vmatprep.subr.bf16.mxu0 0
    %988 = vmatpush1.bf16.msra.mxu0 %v971
    %989 = vmatprep.subr.bf16.mxu0 0
    %990 = vmatpush2.bf16.msra.mxu0 0
    %991 = vmatprep.subr.bf16.mxu0 0
    %992 = vmatpush2.bf16.msra.mxu0 0
    %993 = vmatprep.subr.bf16.mxu0 0
    %994 = vmatpush2.bf16.msra.mxu0 0
    %995 = vmatprep.subr.bf16.mxu0 0
    %996 = vmatpush2.bf16.msra.mxu0 0
    %997 = vmatprep.subr.bf16.mxu0 0
    %998 = vmatpush2.bf16.msra.mxu0 0
    %999 = vmatprep.subr.bf16.mxu0 0
    %1000 = vmatpush2.bf16.msra.mxu0 0
    %1001 = vmatprep.subr.bf16.mxu0 0
    %1002 = vmatpush2.bf16.msra.mxu0 0
    %1003 = vmatprep.subr.bf16.mxu0 0
    %1004 = vmatpush2.bf16.msra.mxu0 0
    %1005 = vmatprep.mubr.bf16.mxu0 0
    %1006 = vmatmul.mubr.bf16.gmra.mxu0 %v968
    %v1007 = vpop.f32.mrf.mxu0
    %v1008 = vadd.f32 0.0, %v1007
    %v1009 = vpop.f32.mrf.mxu0
    %v1010 = vpop.f32.mrf.mxu0
    %v1011 = vpop.f32.mrf.mxu0
    %1012 = vdwg.mxu0
    %v1013 = vpack.c.bf16 %v1008, %v1008
    %1014 = vst.msk [vmem:[#allocation2 + $0x4] sm:$0xf] %vm868, %v1013
    %v1015 = vld [vmem:[#allocation2] sm:$0xff]
    %v1016 = vld [vmem:[%s9] sm:$0xf]
    %v1017 = vld [vmem:[%s9 + $0x4] sm:$0xf]
    %v1018 = vld [vmem:[%s9 + $0x8] sm:$0xf]
    %v1019 = vld [vmem:[%s9 + $0xc] sm:$0xf]
    %v1020 = vld [vmem:[%s9 + $0x10] sm:$0xf]
    %v1021 = vld [vmem:[%s9 + $0x14] sm:$0xf]
    %v1022 = vld [vmem:[%s9 + $0x18] sm:$0xf]
    %v1023 = vld [vmem:[%s9 + $0x1c] sm:$0xf]
    %v1024 = vld [vmem:[%s9 + $0x20] sm:$0xf]
    %v1025 = vld [vmem:[%s9 + $0x24] sm:$0xf]
    %v1026 = vld [vmem:[%s9 + $0x28] sm:$0xf]
    %v1027 = vld [vmem:[%s9 + $0x2c] sm:$0xf]
    %v1028 = vld [vmem:[%s9 + $0x30] sm:$0xf]
    %v1029 = vld [vmem:[%s9 + $0x34] sm:$0xf]
    %v1030 = vld [vmem:[%s9 + $0x38] sm:$0xf]
    %v1031 = vld [vmem:[%s9 + $0x3c] sm:$0xf]
    %v1032 = vld [vmem:[%s9 + $0x40] sm:$0xf]
    %v1033 = vld [vmem:[%s9 + $0x44] sm:$0xf]
    %v1034 = vld [vmem:[%s9 + $0x48] sm:$0xf]
    %v1035 = vld [vmem:[%s9 + $0x4c] sm:$0xf]
    %v1036 = vld [vmem:[%s9 + $0x50] sm:$0xf]
    %v1037 = vld [vmem:[%s9 + $0x54] sm:$0xf]
    %v1038 = vld [vmem:[%s9 + $0x58] sm:$0xf]
    %v1039 = vld [vmem:[%s9 + $0x5c] sm:$0xf]
    %v1040 = vld [vmem:[%s10] sm:$0x1]
    %v1042 = vlaneseq
    %v1043 = vshrl.u32 %v1042, 7
    %v1044 = vsub.s32 0, %v1043
    %v1045 = vrot.slane %v1040, %v1044
    %v1048 = vunpack.c.l.b16 %v1015
    %v1049 = vunpack.c.h.b16 %v1015
    %v1050 = vpack.c.b16 %v1048, %v1048
    %v1051 = vpack.c.b16 %v1049, %v1049
    %v1077 = vunpack.c.l.b16 %v1016
    %v1078 = vunpack.c.l.b16 %v1017
    %v1079 = vunpack.c.l.b16 %v1018
    %v1080 = vunpack.c.l.b16 %v1019
    %v1081 = vunpack.c.l.b16 %v1020
    %v1082 = vunpack.c.l.b16 %v1021
    %v1083 = vunpack.c.l.b16 %v1022
    %v1084 = vunpack.c.l.b16 %v1023
    %v1085 = vunpack.c.l.b16 %v1024
    %v1086 = vunpack.c.l.b16 %v1025
    %v1087 = vunpack.c.l.b16 %v1026
    %v1088 = vunpack.c.l.b16 %v1027
    %v1089 = vunpack.c.l.b16 %v1028
    %v1090 = vunpack.c.l.b16 %v1029
    %v1091 = vunpack.c.l.b16 %v1030
    %v1092 = vunpack.c.l.b16 %v1031
    %v1093 = vunpack.c.l.b16 %v1032
    %v1094 = vunpack.c.l.b16 %v1033
    %v1095 = vunpack.c.l.b16 %v1034
    %v1096 = vunpack.c.l.b16 %v1035
    %v1097 = vunpack.c.l.b16 %v1036
    %v1098 = vunpack.c.l.b16 %v1037
    %v1099 = vunpack.c.l.b16 %v1038
    %v1100 = vunpack.c.l.b16 %v1039
    %v1101 = vpack.c.b16 %v1078, %v1077
    %v1102 = vpack.c.b16 %v1080, %v1079
    %v1103 = vpack.c.b16 %v1082, %v1081
    %v1104 = vpack.c.b16 %v1084, %v1083
    %v1105 = vpack.c.b16 %v1086, %v1085
    %v1106 = vpack.c.b16 %v1088, %v1087
    %v1107 = vpack.c.b16 %v1090, %v1089
    %v1108 = vpack.c.b16 %v1092, %v1091
    %v1109 = vpack.c.b16 %v1094, %v1093
    %v1110 = vpack.c.b16 %v1096, %v1095
    %v1111 = vpack.c.b16 %v1098, %v1097
    %v1112 = vpack.c.b16 %v1100, %v1099
    %v1126 = vsel %vm90, %v1051, 0
    %1128 = vmatprep.subr.bf16.mxu0 0
    %1129 = vmatpush1.bf16.msra.mxu0 %v1108
    %1130 = vmatprep.subr.bf16.mxu0 0
    %1131 = vmatpush1.bf16.msra.mxu0 %v1107
    %1132 = vmatprep.subr.bf16.mxu0 0
    %1133 = vmatpush1.bf16.msra.mxu0 %v1106
    %1134 = vmatprep.subr.bf16.mxu0 0
    %1135 = vmatpush1.bf16.msra.mxu0 %v1105
    %1136 = vmatprep.subr.bf16.mxu0 0
    %1137 = vmatpush1.bf16.msra.mxu0 %v1104
    %1138 = vmatprep.subr.bf16.mxu0 0
    %1139 = vmatpush1.bf16.msra.mxu0 %v1103
    %1140 = vmatprep.subr.bf16.mxu0 0
    %1141 = vmatpush1.bf16.msra.mxu0 %v1102
    %1142 = vmatprep.subr.bf16.mxu0 0
    %1143 = vmatpush1.bf16.msra.mxu0 %v1101
    %1144 = vmatprep.subr.bf16.mxu0 0
    %1145 = vmatpush2.bf16.msra.mxu0 0
    %1146 = vmatprep.subr.bf16.mxu0 0
    %1147 = vmatpush2.bf16.msra.mxu0 0
    %1148 = vmatprep.subr.bf16.mxu0 0
    %1149 = vmatpush2.bf16.msra.mxu0 0
    %1150 = vmatprep.subr.bf16.mxu0 0
    %1151 = vmatpush2.bf16.msra.mxu0 0
    %1152 = vmatprep.subr.bf16.mxu0 0
    %1153 = vmatpush2.bf16.msra.mxu0 %v1112
    %1154 = vmatprep.subr.bf16.mxu0 0
    %1155 = vmatpush2.bf16.msra.mxu0 %v1111
    %1156 = vmatprep.subr.bf16.mxu0 0
    %1157 = vmatpush2.bf16.msra.mxu0 %v1110
    %1158 = vmatprep.subr.bf16.mxu0 0
    %1159 = vmatpush2.bf16.msra.mxu0 %v1109
    %1160 = vmatprep.mubr.bf16.mxu0 %v1126
    %1161 = vmatmul.mubr.bf16.gmra.mxu0 %v1050
    %v1162 = vpop.f32.mrf.mxu0
    %v1163 = vadd.f32 %v1045, %v1162
    %v1164 = vpop.f32.mrf.mxu0
    %v1165 = vpop.f32.mrf.mxu0
    %v1166 = vpop.f32.mrf.mxu0
    %1167 = vdwg.mxu0
    %vm1168 = vcmp.gt.f32.partialorder %v1163, 0.0
    %v1169 = vmul.f32 %v1163, 0.01
    %v1170 = vsel %vm1168, %v1163, %v1169
    %v1171 = vadd.f32 %v1170, %v40
    %1172 = vst.msk [vmem:[#allocation3] sm:$0xff] %vm90, %v1171
    // Predicated region
    $region46: #{gat_layer_forward.1} parent=1 // pred_check
      _
    $region47: #{gat_layer_forward.1} parent=1 // pred_check_branch
      %1174 = sbr.rel (0) target = $region49
    $region48: #{gat_layer_forward.1} parent=1 // pred_region
      %s1176 = ssub.s32 128, 128
      %1177 = vsyncadd [#allocation4], %s1176
      %s1179 = sshll.u32 [#allocation3], 4
      %s1180 = int_to_ptr.vmem [resolvable:$true] %s1179
      %1182 = dma.vmem_to_hbm [thread:$0]  %s1180, 128, %s11, [#allocation4]
    $region49: #{gat_layer_forward.1} parent=1 // pred_fallthru
      _
    // Predicated region
    $region50: #{gat_layer_forward.1} parent=1 // pred_check
      _
    $region51: #{gat_layer_forward.1} parent=1 // pred_check_branch
      %1184 = sbr.rel (0) target = $region53
    $region52: #{gat_layer_forward.1} parent=1 // pred_region
      %1185 = dma.done [#allocation4], 128
    $region53: #{gat_layer_forward.1} parent=1 // pred_fallthru
      _
    %1186 = vsyncpa [#allocation4], 1

</llo_original>
